<compile_context>
chip_gen: v7x
topology: tpu7x:2x2x1
jax: 0.10.0
libtpu: 0.0.40
codegen_flags: <defaults>
</compile_context>

<pallas_src>
import jax
import jax.numpy as jnp
from jax.experimental import pallas as pl
from jax.experimental.pallas import tpu as pltpu


# ----------------------------------------------------------------------------
# Helpers
# ----------------------------------------------------------------------------
def _round_up(x, m):
    return (x + m - 1) // m * m


def _vmem_limit_bytes():
    """~75% of physical VMEM (≈48 MiB on v7x, capped at 96 MiB on v5e/v6e)."""
    try:
        cap = int(getattr(pltpu.get_tpu_info(), "vmem_capacity_bytes", 0))
        if cap > 0:
            return min(cap * 3 // 4, 96 << 20)
    except Exception:
        pass
    return 64 << 20  # conservative default that works on every chip


def _pick_row_tile(m_rows, hidden):
    """Row tile: 128..512, multiple of 8; smaller only if M itself is small."""
    tm_max = 256 if hidden >= 2048 else 512
    if m_rows <= tm_max:
        return max(_round_up(m_rows, 8), 8)
    return tm_max


def _pick_col_tile(hidden, itemsize):
    """N tile for the second matmul: full H as one lane-dense slab unless the
    (H, tn) w2 block would be large; then 128-aligned chunks."""
    if hidden * hidden * itemsize <= (8 << 20):
        return hidden
    for tn in (1024, 512, 256, 128):
        if hidden % tn == 0:
            return tn
    return hidden  # ragged hidden size: fall back to a single slab


# ----------------------------------------------------------------------------
# Kernel: fused  Linear -> SiLU -> Linear  on one (tm, K) row tile.
#   Grid = (row tiles, output-column tiles of the 2nd matmul).
#   The hidden activation h is computed once per row tile (j == 0) into VMEM
#   scratch and reused for every output-column tile j.
# ----------------------------------------------------------------------------
def _mlp_kernel(x_ref, w1_ref, b1_ref, w2_ref, b2_ref, o_ref, h_ref):
    # x:(tm,K) w1:(K,H) b1:(1,H) w2:(H,tn) b2:(1,tn) -> o:(tm,tn); h:(tm,H)
    @pl.when(pl.program_id(1) == 0)
    def _():
        h = jnp.dot(x_ref[...], w1_ref[...], preferred_element_type=jnp.float32)
        h = h + b1_ref[...].astype(jnp.float32)
        # SiLU in f32: sigmoid on the EUP, multiply on the VPU (hide under MXU).
        h = h * jax.lax.logistic(h)
        h_ref[...] = h.astype(h_ref.dtype)

    o = jnp.dot(h_ref[...], w2_ref[...], preferred_element_type=jnp.float32)
    o = o + b2_ref[...].astype(jnp.float32)
    o_ref[...] = o.astype(o_ref.dtype)


# ----------------------------------------------------------------------------
# One-time parameter prep (hoisted out of the per-call forward).
# ----------------------------------------------------------------------------
def prepare_params(params, compute_dtype=None):
    """Transpose torch (out, in) Linear weights to (in, out) and reshape the
    biases to (1, H) rows.  Optionally cast weights to `compute_dtype`
    (e.g. jnp.bfloat16) for full-rate MXU on v6e/v7x; accumulation stays f32.
    """
    w1, b1, w2, b2 = params["w1"], params["b1"], params["w2"], params["b2"]
    H = w1.shape[0]
    w1t, w2t = jnp.asarray(w1).T, jnp.asarray(w2).T
    if compute_dtype is not None:
        w1t = w1t.astype(compute_dtype)
        w2t = w2t.astype(compute_dtype)
    return {
        "w1t": w1t,                                # (K, H)
        "b1r": jnp.asarray(b1).reshape(1, H),      # (1, H)
        "w2t": w2t,                                # (H, H)
        "b2r": jnp.asarray(b2).reshape(1, H),      # (1, H)
    }


# ----------------------------------------------------------------------------
# Forward wrapper
# ----------------------------------------------------------------------------
def latent_embedder_forward(prepped, latents, *, compute_dtype=None):
    """Pallas forward of LatentEmbedder.

    prepped: output of prepare_params (pre-transposed weights, row biases)
    latents: (..., latent_embedding_size)
    """
    w1t, b1r = prepped["w1t"], prepped["b1r"]
    w2t, b2r = prepped["w2t"], prepped["b2r"]
    K, H = w1t.shape

    x2d = latents.reshape(-1, K)
    if compute_dtype is not None:
        x2d = x2d.astype(compute_dtype)
    M = x2d.shape[0]

    # Row tiling + padding so awkward M values still pipeline instead of
    # collapsing into a single huge block.
    tm = _pick_row_tile(M, H)
    Mp = _round_up(M, tm)
    if Mp != M:
        x2d = jnp.pad(x2d, ((0, Mp - M), (0, 0)))

    tn = _pick_col_tile(H, w2t.dtype.itemsize)
    n_i, n_j = Mp // tm, H // tn

    # Explicit output dtype decision (avoids silent downcast when input /
    # weight dtypes differ).
    out_dtype = jnp.result_type(latents.dtype, w1t.dtype)

    cost = pl.CostEstimate(
        flops=2 * M * (K * H + H * H),
        transcendentals=M * H,
        bytes_accessed=(x2d.size * x2d.dtype.itemsize
                        + w1t.size * w1t.dtype.itemsize
                        + w2t.size * w2t.dtype.itemsize
                        + b1r.size * b1r.dtype.itemsize
                        + b2r.size * b2r.dtype.itemsize
                        + Mp * H * jnp.dtype(out_dtype).itemsize),
    )

    def build(single_buffer_invariant):
        # Grid-invariant operands: single-buffer to halve their VMEM footprint.
        inv = {"pipeline_mode": pl.Buffered(1)} if single_buffer_invariant else {}
        inv_j = inv if n_j == 1 else {}   # w2/b2 only invariant when N untiled
        in_specs = [
            pl.BlockSpec((tm, K), lambda i, j: (i, 0)),
            pl.BlockSpec((K, H), lambda i, j: (0, 0), **inv),
            pl.BlockSpec((1, H), lambda i, j: (0, 0), **inv),
            pl.BlockSpec((H, tn), lambda i, j: (0, j), **inv_j),
            pl.BlockSpec((1, tn), lambda i, j: (0, j), **inv_j),
        ]
        return pl.pallas_call(
            _mlp_kernel,
            out_shape=jax.ShapeDtypeStruct((Mp, H), out_dtype),
            grid=(n_i, n_j),
            in_specs=in_specs,
            out_specs=pl.BlockSpec((tm, tn), lambda i, j: (i, j)),
            scratch_shapes=[pltpu.VMEM((tm, H), w2t.dtype)],
            compiler_params=pltpu.CompilerParams(
                dimension_semantics=("parallel", "arbitrary"),
                vmem_limit_bytes=_vmem_limit_bytes(),
            ),
            cost_estimate=cost,
        )

    try:
        out = jax.block_until_ready(build(True)(x2d, w1t, b1r, w2t, b2r))
    except Exception:
        # Fallback for JAX versions that reject pl.Buffered(1): default buffers.
        out = build(False)(x2d, w1t, b1r, w2t, b2r)

    if Mp != M:
        out = out[:M]
    return out.reshape(*latents.shape[:-1], H)


# ----------------------------------------------------------------------------
# Pure-JAX reference (mirrors the PyTorch module) for a sanity check.
# ----------------------------------------------------------------------------
def reference_forward(params, latents):
    h = latents @ params["w1"].T + params["b1"]
    h = h * jax.nn.sigmoid(h)  # SiLU
    return h @ params["w2"].T + params["b2"]


# ----------------------------------------------------------------------------
# Deterministic test
# ----------------------------------------------------------------------------
if __name__ == "__main__":
    latent_embedding_size = 32
    hidden_size = 64

    key = jax.random.PRNGKey(0)
    k1, k2, k3, k4, k5, k6 = jax.random.split(key, 6)

    params = {
        # nn.init.normal_(weight, std=0.02) as in the PyTorch module.
        "w1": 0.02 * jax.random.normal(
            k1, (hidden_size, latent_embedding_size), jnp.float32),
        "b1": 0.02 * jax.random.normal(k2, (hidden_size,), jnp.float32),
        "w2": 0.02 * jax.random.normal(
            k3, (hidden_size, hidden_size), jnp.float32),
        "b2": 0.02 * jax.random.normal(k4, (hidden_size,), jnp.float32),
    }

    # One-time parameter prep (transposes hoisted out of the forward).
    prepped = prepare_params(params)

    # Case 1: plain 2-D batch.
    latents = jax.random.normal(k5, (8, latent_embedding_size), jnp.float32)
    out = jax.block_until_ready(latent_embedder_forward(prepped, latents))
    ref = reference_forward(params, latents)
    assert out.shape == (8, hidden_size), out.shape
    assert jnp.allclose(out, ref, atol=1e-5, rtol=1e-5), (
        float(jnp.max(jnp.abs(out - ref))))

    # Case 2: 3-D leading dims with a ragged row count (exercises padding path).
    latents3 = jax.random.normal(k6, (2, 5, latent_embedding_size), jnp.float32)
    out3 = jax.block_until_ready(latent_embedder_forward(prepped, latents3))
    ref3 = reference_forward(params, latents3)
    assert out3.shape == (2, 5, hidden_size), out3.shape
    assert jnp.allclose(out3, ref3, atol=1e-5, rtol=1e-5), (
        float(jnp.max(jnp.abs(out3 - ref3))))

    print("KERNEL_OK")
</pallas_src>

<mosaic_0001>
module attributes {stable_mosaic.version = 11 : i64} {
  func.func @_mlp_kernel(%arg0: i32, %arg1: i32, %arg2: memref<8x32xf32, #tpu.memory_space<vmem>>, %arg3: memref<32x64xf32, #tpu.memory_space<vmem>>, %arg4: memref<1x64xf32, #tpu.memory_space<vmem>>, %arg5: memref<64x64xf32, #tpu.memory_space<vmem>>, %arg6: memref<1x64xf32, #tpu.memory_space<vmem>>, %arg7: memref<8x64xf32, #tpu.memory_space<vmem>>, %arg8: memref<8x64xf32, #tpu.memory_space<vmem>>) attributes {dimension_semantics = [#tpu.dimension_semantics<parallel>, #tpu.dimension_semantics<arbitrary>], iteration_bounds = array<i64: 1, 1>, scalar_prefetch = 0 : i64, scratch_operands = 1 : i64, tpu.core_type = #tpu.core_type<tc>, window_params = [{transform_indices = @transform_0, window_bounds = array<i64: 8, 32>}, {pipeline_mode = #tpu.pipeline_mode<synchronous>, transform_indices = @transform_1, window_bounds = array<i64: 32, 64>}, {pipeline_mode = #tpu.pipeline_mode<synchronous>, transform_indices = @transform_2, window_bounds = array<i64: 1, 64>}, {pipeline_mode = #tpu.pipeline_mode<synchronous>, transform_indices = @transform_3, window_bounds = array<i64: 64, 64>}, {pipeline_mode = #tpu.pipeline_mode<synchronous>, transform_indices = @transform_4, window_bounds = array<i64: 1, 64>}, {transform_indices = @transform_5, window_bounds = array<i64: 8, 64>}]} {
    %c0_i32 = arith.constant 0 : i32
    %0 = arith.cmpi eq, %arg1, %c0_i32 : i32
    %1 = arith.extui %0 : i1 to i32
    %c0_i32_0 = arith.constant 0 : i32
    %2 = arith.cmpi ne, %1, %c0_i32_0 : i32
    scf.if %2 {
      %c0_8 = arith.constant 0 : index
      %c0_9 = arith.constant 0 : index
      %10 = vector.load %arg2[%c0_8, %c0_9] : memref<8x32xf32, #tpu.memory_space<vmem>>, vector<8x32xf32>
      %c0_10 = arith.constant 0 : index
      %c0_11 = arith.constant 0 : index
      %11 = vector.load %arg3[%c0_10, %c0_11] : memref<32x64xf32, #tpu.memory_space<vmem>>, vector<32x64xf32>
      %cst_12 = arith.constant dense<0.000000e+00> : vector<8x64xf32>
      %12 = tpu.matmul %10, %11, %cst_12 {dimension_numbers = #tpu.dot_dimension_numbers<[1], [0], [0], [1], [0, 0, 1, 1], [], []>} : vector<8x32xf32>, vector<32x64xf32>, vector<8x64xf32> -> vector<8x64xf32>
      %c0_13 = arith.constant 0 : index
      %c0_14 = arith.constant 0 : index
      %13 = vector.load %arg4[%c0_13, %c0_14] : memref<1x64xf32, #tpu.memory_space<vmem>>, vector<1x64xf32>
      %14 = vector.broadcast %13 : vector<1x64xf32> to vector<8x64xf32>
      %15 = arith.addf %12, %14 : vector<8x64xf32>
      %16 = arith.negf %15 : vector<8x64xf32>
      %17 = math.exp %16 : vector<8x64xf32>
      %cst_15 = arith.constant 1.000000e+00 : f32
      %18 = vector.broadcast %cst_15 : f32 to vector<8x64xf32>
      %19 = arith.addf %18, %17 : vector<8x64xf32>
      %20 = arith.divf %18, %19 : vector<8x64xf32>
      %21 = arith.mulf %15, %20 : vector<8x64xf32>
      %c0_16 = arith.constant 0 : index
      %c0_17 = arith.constant 0 : index
      %22 = vector.load %arg8[%c0_16, %c0_17] : memref<8x64xf32, #tpu.memory_space<vmem>>, vector<8x64xf32>
      tpu.vector_store %arg8[%c0_16, %c0_17], %21 {strides = array<i32>} : memref<8x64xf32, #tpu.memory_space<vmem>>, vector<8x64xf32>,
    } else {
    }
    %c0 = arith.constant 0 : index
    %c0_1 = arith.constant 0 : index
    %3 = vector.load %arg8[%c0, %c0_1] : memref<8x64xf32, #tpu.memory_space<vmem>>, vector<8x64xf32>
    %c0_2 = arith.constant 0 : index
    %c0_3 = arith.constant 0 : index
    %4 = vector.load %arg5[%c0_2, %c0_3] : memref<64x64xf32, #tpu.memory_space<vmem>>, vector<64x64xf32>
    %cst = arith.constant dense<0.000000e+00> : vector<8x64xf32>
    %5 = tpu.matmul %3, %4, %cst {dimension_numbers = #tpu.dot_dimension_numbers<[1], [0], [0], [1], [0, 0, 1, 1], [], []>} : vector<8x64xf32>, vector<64x64xf32>, vector<8x64xf32> -> vector<8x64xf32>
    %c0_4 = arith.constant 0 : index
    %c0_5 = arith.constant 0 : index
    %6 = vector.load %arg6[%c0_4, %c0_5] : memref<1x64xf32, #tpu.memory_space<vmem>>, vector<1x64xf32>
    %7 = vector.broadcast %6 : vector<1x64xf32> to vector<8x64xf32>
    %8 = arith.addf %5, %7 : vector<8x64xf32>
    %c0_6 = arith.constant 0 : index
    %c0_7 = arith.constant 0 : index
    %9 = vector.load %arg7[%c0_6, %c0_7] : memref<8x64xf32, #tpu.memory_space<vmem>>, vector<8x64xf32>
    tpu.vector_store %arg7[%c0_6, %c0_7], %8 {strides = array<i32>} : memref<8x64xf32, #tpu.memory_space<vmem>>, vector<8x64xf32>,
    return
  }
  func.func @transform_0(%arg0: i32, %arg1: i32) -> (i32, i32) {
    %c0_i32 = arith.constant 0 : i32
    %c0_i32_0 = arith.constant 0 : i32
    return %arg0, %c0_i32 : i32, i32
  }
  func.func @transform_1(%arg0: i32, %arg1: i32) -> (i32, i32) {
    %c0_i32 = arith.constant 0 : i32
    %c0_i32_0 = arith.constant 0 : i32
    %c0_i32_1 = arith.constant 0 : i32
    return %c0_i32, %c0_i32_0 : i32, i32
  }
  func.func @transform_2(%arg0: i32, %arg1: i32) -> (i32, i32) {
    %c0_i32 = arith.constant 0 : i32
    %c0_i32_0 = arith.constant 0 : i32
    %c0_i32_1 = arith.constant 0 : i32
    return %c0_i32, %c0_i32_0 : i32, i32
  }
  func.func @transform_3(%arg0: i32, %arg1: i32) -> (i32, i32) {
    %c0_i32 = arith.constant 0 : i32
    %c0_i32_0 = arith.constant 0 : i32
    return %c0_i32, %arg1 : i32, i32
  }
  func.func @transform_4(%arg0: i32, %arg1: i32) -> (i32, i32) {
    %c0_i32 = arith.constant 0 : i32
    %c0_i32_0 = arith.constant 0 : i32
    return %c0_i32, %arg1 : i32, i32
  }
  func.func @transform_5(%arg0: i32, %arg1: i32) -> (i32, i32) {
    %c0_i32 = arith.constant 0 : i32
    return %arg0, %arg1 : i32, i32
  }
}

module attributes {stable_mosaic.version = 11 : i64} {
  func.func @_mlp_kernel(%arg0: i32, %arg1: i32, %arg2: memref<8x32xf32, #tpu.memory_space<vmem>>, %arg3: memref<32x64xf32, #tpu.memory_space<vmem>>, %arg4: memref<1x64xf32, #tpu.memory_space<vmem>>, %arg5: memref<64x64xf32, #tpu.memory_space<vmem>>, %arg6: memref<1x64xf32, #tpu.memory_space<vmem>>, %arg7: memref<8x64xf32, #tpu.memory_space<vmem>>, %arg8: memref<8x64xf32, #tpu.memory_space<vmem>>) attributes {dimension_semantics = [#tpu.dimension_semantics<parallel>, #tpu.dimension_semantics<arbitrary>], iteration_bounds = array<i64: 1, 1>, scalar_prefetch = 0 : i64, scratch_operands = 1 : i64, tpu.core_type = #tpu.core_type<tc>, window_params = [{transform_indices = @transform_0, window_bounds = array<i64: 8, 32>}, {pipeline_mode = #tpu.pipeline_mode<synchronous>, transform_indices = @transform_1, window_bounds = array<i64: 32, 64>}, {pipeline_mode = #tpu.pipeline_mode<synchronous>, transform_indices = @transform_2, window_bounds = array<i64: 1, 64>}, {transform_indices = @transform_3, window_bounds = array<i64: 64, 64>}, {transform_indices = @transform_4, window_bounds = array<i64: 1, 64>}, {transform_indices = @transform_5, window_bounds = array<i64: 8, 64>}]} {
    %c0_i32 = arith.constant 0 : i32
    %0 = arith.cmpi eq, %arg1, %c0_i32 : i32
    %1 = arith.extui %0 : i1 to i32
    %c0_i32_0 = arith.constant 0 : i32
    %2 = arith.cmpi ne, %1, %c0_i32_0 : i32
    scf.if %2 {
      %c0_8 = arith.constant 0 : index
      %c0_9 = arith.constant 0 : index
      %10 = vector.load %arg2[%c0_8, %c0_9] : memref<8x32xf32, #tpu.memory_space<vmem>>, vector<8x32xf32>
      %c0_10 = arith.constant 0 : index
      %c0_11 = arith.constant 0 : index
      %11 = vector.load %arg3[%c0_10, %c0_11] : memref<32x64xf32, #tpu.memory_space<vmem>>, vector<32x64xf32>
      %cst_12 = arith.constant dense<0.000000e+00> : vector<8x64xf32>
      %12 = tpu.matmul %10, %11, %cst_12 {dimension_numbers = #tpu.dot_dimension_numbers<[1], [0], [0], [1], [0, 0, 1, 1], [], []>} : vector<8x32xf32>, vector<32x64xf32>, vector<8x64xf32> -> vector<8x64xf32>
      %c0_13 = arith.constant 0 : index
      %c0_14 = arith.constant 0 : index
      %13 = vector.load %arg4[%c0_13, %c0_14] : memref<1x64xf32, #tpu.memory_space<vmem>>, vector<1x64xf32>
      %14 = vector.broadcast %13 : vector<1x64xf32> to vector<8x64xf32>
      %15 = arith.addf %12, %14 : vector<8x64xf32>
      %16 = arith.negf %15 : vector<8x64xf32>
      %17 = math.exp %16 : vector<8x64xf32>
      %cst_15 = arith.constant 1.000000e+00 : f32
      %18 = vector.broadcast %cst_15 : f32 to vector<8x64xf32>
      %19 = arith.addf %18, %17 : vector<8x64xf32>
      %20 = arith.divf %18, %19 : vector<8x64xf32>
      %21 = arith.mulf %15, %20 : vector<8x64xf32>
      %c0_16 = arith.constant 0 : index
      %c0_17 = arith.constant 0 : index
      %22 = vector.load %arg8[%c0_16, %c0_17] : memref<8x64xf32, #tpu.memory_space<vmem>>, vector<8x64xf32>
      tpu.vector_store %arg8[%c0_16, %c0_17], %21 {strides = array<i32>} : memref<8x64xf32, #tpu.memory_space<vmem>>, vector<8x64xf32>,
    } else {
    }
    %c0 = arith.constant 0 : index
    %c0_1 = arith.constant 0 : index
    %3 = vector.load %arg8[%c0, %c0_1] : memref<8x64xf32, #tpu.memory_space<vmem>>, vector<8x64xf32>
    %c0_2 = arith.constant 0 : index
    %c0_3 = arith.constant 0 : index
    %4 = vector.load %arg5[%c0_2, %c0_3] : memref<64x64xf32, #tpu.memory_space<vmem>>, vector<64x64xf32>
    %cst = arith.constant dense<0.000000e+00> : vector<8x64xf32>
    %5 = tpu.matmul %3, %4, %cst {dimension_numbers = #tpu.dot_dimension_numbers<[1], [0], [0], [1], [0, 0, 1, 1], [], []>} : vector<8x64xf32>, vector<64x64xf32>, vector<8x64xf32> -> vector<8x64xf32>
    %c0_4 = arith.constant 0 : index
    %c0_5 = arith.constant 0 : index
    %6 = vector.load %arg6[%c0_4, %c0_5] : memref<1x64xf32, #tpu.memory_space<vmem>>, vector<1x64xf32>
    %7 = vector.broadcast %6 : vector<1x64xf32> to vector<8x64xf32>
    %8 = arith.addf %5, %7 : vector<8x64xf32>
    %c0_6 = arith.constant 0 : index
    %c0_7 = arith.constant 0 : index
    %9 = vector.load %arg7[%c0_6, %c0_7] : memref<8x64xf32, #tpu.memory_space<vmem>>, vector<8x64xf32>
    tpu.vector_store %arg7[%c0_6, %c0_7], %8 {strides = array<i32>} : memref<8x64xf32, #tpu.memory_space<vmem>>, vector<8x64xf32>,
    return
  }
  func.func @transform_0(%arg0: i32, %arg1: i32) -> (i32, i32) {
    %c0_i32 = arith.constant 0 : i32
    %c0_i32_0 = arith.constant 0 : i32
    return %arg0, %c0_i32 : i32, i32
  }
  func.func @transform_1(%arg0: i32, %arg1: i32) -> (i32, i32) {
    %c0_i32 = arith.constant 0 : i32
    %c0_i32_0 = arith.constant 0 : i32
    %c0_i32_1 = arith.constant 0 : i32
    return %c0_i32, %c0_i32_0 : i32, i32
  }
  func.func @transform_2(%arg0: i32, %arg1: i32) -> (i32, i32) {
    %c0_i32 = arith.constant 0 : i32
    %c0_i32_0 = arith.constant 0 : i32
    %c0_i32_1 = arith.constant 0 : i32
    return %c0_i32, %c0_i32_0 : i32, i32
  }
  func.func @transform_3(%arg0: i32, %arg1: i32) -> (i32, i32) {
    %c0_i32 = arith.constant 0 : i32
    %c0_i32_0 = arith.constant 0 : i32
    return %c0_i32, %arg1 : i32, i32
  }
  func.func @transform_4(%arg0: i32, %arg1: i32) -> (i32, i32) {
    %c0_i32 = arith.constant 0 : i32
    %c0_i32_0 = arith.constant 0 : i32
    return %c0_i32, %arg1 : i32, i32
  }
  func.func @transform_5(%arg0: i32, %arg1: i32) -> (i32, i32) {
    %c0_i32 = arith.constant 0 : i32
    return %arg0, %arg1 : i32, i32
  }
}

</mosaic_0001>

<llo_original>
// kernel: tpu_custom_call.1
$region0: #{tpu_custom_call.1}
  #allocation0 [shape = 'u32[]', space=smem, size = 0x4, offset = 0x4, fixed_abs, tag = 'smem constant byte address 0x4 - core index']
  #allocation1 [shape = 'u32[144,128]{1,0:T(1,128)}', space=vmem, size = 0x12000, scoped, tag = 'internal scratch']
  #allocation2 [shape = 'f32[8,64]{1,0:T(8,128)}', space=vmem, size = 0x1000, scoped, tag = 'scratch operand']
  %s0 = inlined_call_operand.hbm [shape: f32[8,32], index: 0, kind: input, shape index: {}]
  %s1 = inlined_call_operand.hbm [shape: f32[32,64], index: 1, kind: input, shape index: {}]
  %s2 = inlined_call_operand.hbm [shape: f32[1,64], index: 2, kind: input, shape index: {}]
  %s3 = inlined_call_operand.hbm [shape: f32[64,64], index: 3, kind: input, shape index: {}]
  %s4 = inlined_call_operand.hbm [shape: f32[1,64], index: 4, kind: input, shape index: {}]
  %s5 = inlined_call_operand.hbm [shape: f32[8,64], index: 5, kind: output, shape index: {}]
  %s6 = sld [smem:[#allocation0]]
  $region54: #{tpu_custom_call.1} parent=0
    _
  %s8 = ssub.s32 1, %s6
  %s9 = scalar_select 0, %s8, %s6
  $region1: #{tpu_custom_call.1} parent=0
    #allocation3 [shape = 'u8[4096]{0}', space=vmem, size = 0x1000, scoped, tag = 'input window, operand 0, single buffered']
    #allocation4 [shape = 's32[1]{0}', space=sflag, size = 0x4, scoped, tag = 'scoped memory for tpu_custom_call.1']
    #allocation5 [shape = 's32[1]{0}', space=sflag, size = 0x4, scoped, tag = 'scoped memory for tpu_custom_call.1']
    #allocation6 [shape = 'u8[16384]{0}', space=vmem, size = 0x4000, scoped, tag = 'input window, operand 1, single buffered']
    #allocation7 [shape = 's32[1]{0}', space=sflag, size = 0x4, scoped, tag = 'scoped memory for tpu_custom_call.1']
    #allocation8 [shape = 'u8[512]{0}', space=vmem, size = 0x400, scoped, tag = 'input window, operand 2, single buffered']
    #allocation9 [shape = 'u8[32768]{0}', space=vmem, size = 0x8000, scoped, tag = 'input window, operand 3, single buffered']
    #allocation10 [shape = 's32[1]{0}', space=sflag, size = 0x4, scoped, tag = 'scoped memory for tpu_custom_call.1']
    #allocation11 [shape = 'u8[512]{0}', space=vmem, size = 0x400, scoped, tag = 'input window, operand 4, single buffered']
    #allocation12 [shape = 'u8[4096]{0}', space=vmem, size = 0x1000, scoped, tag = 'output window, operand 0, single buffered']
    %10 = vsyncpa [#allocation4], 0
    %11 = vsyncpa [#allocation7], 0
    %12 = vsyncpa [#allocation10], 0
    %13 = vsyncpa [#allocation5], 0
    // Predicated region
    $region2: #{tpu_custom_call.1} parent=1 // pred_check
      _
    $region3: #{tpu_custom_call.1} parent=1 // pred_check_branch
      %15 = sbr.rel (0) target = $region5
    $region4: #{tpu_custom_call.1} parent=1 // pred_region
      %s17 = ssub.s32 128, 128
      %18 = vsyncadd [#allocation4], %s17
      %s20 = sshll.u32 [#allocation3], 4
      %s21 = int_to_ptr.vmem [resolvable:$true] %s20
      %23 = dma.hbm_to_vmem [thread:$0]  %s0, 128, %s21, [#allocation4]
    $region5: #{tpu_custom_call.1} parent=1 // pred_fallthru
      _
    // Predicated region
    $region6: #{tpu_custom_call.1} parent=1 // pred_check
      _
    $region7: #{tpu_custom_call.1} parent=1 // pred_check_branch
      %25 = sbr.rel (0) target = $region9
    $region8: #{tpu_custom_call.1} parent=1 // pred_region
      %s27 = ssub.s32 512, 512
      %28 = vsyncadd [#allocation7], %s27
      %s29 = sshll.u32 [#allocation6], 4
      %s30 = int_to_ptr.vmem [resolvable:$true] %s29
      %35 = dma.hbm_to_vmem [thread:$0]  %s1, 512, %s30, [#allocation7], 128, 128, 8
    $region9: #{tpu_custom_call.1} parent=1 // pred_fallthru
      _
    // Predicated region
    $region10: #{tpu_custom_call.1} parent=1 // pred_check
      _
    $region11: #{tpu_custom_call.1} parent=1 // pred_check_branch
      %37 = sbr.rel (0) target = $region13
    $region12: #{tpu_custom_call.1} parent=1 // pred_region
      %s39 = ssub.s32 16, 16
      %40 = vsyncadd [#allocation7], %s39
      %s42 = sshll.u32 [#allocation8], 4
      %s43 = int_to_ptr.vmem [resolvable:$true] %s42
      %45 = dma.hbm_to_vmem [thread:$0]  %s2, 16, %s43, [#allocation7]
    $region13: #{tpu_custom_call.1} parent=1 // pred_fallthru
      _
    // Predicated region
    $region14: #{tpu_custom_call.1} parent=1 // pred_check
      _
    $region15: #{tpu_custom_call.1} parent=1 // pred_check_branch
      %47 = sbr.rel (0) target = $region17
    $region16: #{tpu_custom_call.1} parent=1 // pred_region
      %s49 = ssub.s32 1024, 1024
      %50 = vsyncadd [#allocation10], %s49
      %s51 = sshll.u32 [#allocation9], 4
      %s52 = int_to_ptr.vmem [resolvable:$true] %s51
      %57 = dma.hbm_to_vmem [thread:$0]  %s3, 1024, %s52, [#allocation10], 128, 128, 8
    $region17: #{tpu_custom_call.1} parent=1 // pred_fallthru
      _
    // Predicated region
    $region18: #{tpu_custom_call.1} parent=1 // pred_check
      _
    $region19: #{tpu_custom_call.1} parent=1 // pred_check_branch
      %59 = sbr.rel (0) target = $region21
    $region20: #{tpu_custom_call.1} parent=1 // pred_region
      %s61 = ssub.s32 16, 16
      %62 = vsyncadd [#allocation10], %s61
      %s64 = sshll.u32 [#allocation11], 4
      %s65 = int_to_ptr.vmem [resolvable:$true] %s64
      %67 = dma.hbm_to_vmem [thread:$0]  %s4, 16, %s65, [#allocation10]
    $region21: #{tpu_custom_call.1} parent=1 // pred_fallthru
      _
    // Predicated region
    $region22: #{tpu_custom_call.1} parent=1 // pred_check
      _
    $region23: #{tpu_custom_call.1} parent=1 // pred_check_branch
      %69 = sbr.rel (0) target = $region25
    $region24: #{tpu_custom_call.1} parent=1 // pred_region
      %70 = dma.done [#allocation4], 128
    $region25: #{tpu_custom_call.1} parent=1 // pred_fallthru
      _
    // Predicated region
    $region26: #{tpu_custom_call.1} parent=1 // pred_check
      _
    $region27: #{tpu_custom_call.1} parent=1 // pred_check_branch
      %72 = sbr.rel (0) target = $region29
    $region28: #{tpu_custom_call.1} parent=1 // pred_region
      %73 = dma.done [#allocation7], 512
    $region29: #{tpu_custom_call.1} parent=1 // pred_fallthru
      _
    // Predicated region
    $region30: #{tpu_custom_call.1} parent=1 // pred_check
      _
    $region31: #{tpu_custom_call.1} parent=1 // pred_check_branch
      %75 = sbr.rel (0) target = $region33
    $region32: #{tpu_custom_call.1} parent=1 // pred_region
      %76 = dma.done [#allocation7], 16
    $region33: #{tpu_custom_call.1} parent=1 // pred_fallthru
      _
    // Predicated region
    $region34: #{tpu_custom_call.1} parent=1 // pred_check
      _
    $region35: #{tpu_custom_call.1} parent=1 // pred_check_branch
      %78 = sbr.rel (0) target = $region37
    $region36: #{tpu_custom_call.1} parent=1 // pred_region
      %79 = dma.done [#allocation10], 1024
    $region37: #{tpu_custom_call.1} parent=1 // pred_fallthru
      _
    // Predicated region
    $region38: #{tpu_custom_call.1} parent=1 // pred_check
      _
    $region39: #{tpu_custom_call.1} parent=1 // pred_check_branch
      %81 = sbr.rel (0) target = $region41
    $region40: #{tpu_custom_call.1} parent=1 // pred_region
      %82 = dma.done [#allocation10], 16
    $region41: #{tpu_custom_call.1} parent=1 // pred_fallthru
      _
    %p83 = scmp.eq.s32.totalorder 0, 0
    // Predicated region
    $region42: #{tpu_custom_call.1} parent=1 // pred_check
      %p84 = pneg %p83
    $region43: #{tpu_custom_call.1} parent=1 // pred_check_branch
      %86 = sbr.rel (%p84) target = $region45
    $region44: #{tpu_custom_call.1} parent=1 // pred_region
      %v87 = vld [vmem:[#allocation3] sm:$0xff]
      %v88 = vld [vmem:[#allocation6] sm:$0xff]
      %v89 = vld [vmem:[#allocation6 + $0x8] sm:$0xff]
      %v90 = vld [vmem:[#allocation6 + $0x10] sm:$0xff]
      %v91 = vld [vmem:[#allocation6 + $0x18] sm:$0xff]
      %v92 = vld [vmem:[#allocation8] sm:$0x1]
      %v94 = vlaneseq
      %v95 = vshrl.u32 %v94, 7
      %v96 = vsub.s32 0, %v95
      %v97 = vrot.slane %v92, %v96
      %vm99 = vcmask 261120
      %v101 = vsel %vm99, %v87, 0
      %103 = vmatprep.subr.mxu0 0.0
      %104 = vmatpush1.msra.mxu0 %v88
      %105 = vmatprep.subr.mxu0 0.0
      %106 = vmatpush1.msra.mxu0 %v89
      %107 = vmatprep.subr.mxu0 0.0
      %108 = vmatpush1.msra.mxu0 %v90
      %109 = vmatprep.subr.mxu0 0.0
      %110 = vmatpush1.msra.mxu0 %v91
      %111 = vmatprep.subr.mxu0 0.0
      %112 = vmatpush1.msra.mxu0 0.0
      %113 = vmatprep.subr.mxu0 0.0
      %114 = vmatpush1.msra.mxu0 0.0
      %115 = vmatprep.subr.mxu0 0.0
      %116 = vmatpush1.msra.mxu0 0.0
      %117 = vmatprep.subr.mxu0 0.0
      %118 = vmatpush1.msra.mxu0 0.0
      %119 = vmatprep.subr.mxu0 0.0
      %120 = vmatpush1.msra.mxu0 0.0
      %121 = vmatprep.subr.mxu0 0.0
      %122 = vmatpush1.msra.mxu0 0.0
      %123 = vmatprep.subr.mxu0 0.0
      %124 = vmatpush1.msra.mxu0 0.0
      %125 = vmatprep.subr.mxu0 0.0
      %126 = vmatpush1.msra.mxu0 0.0
      %127 = vmatprep.subr.mxu0 0.0
      %128 = vmatpush1.msra.mxu0 0.0
      %129 = vmatprep.subr.mxu0 0.0
      %130 = vmatpush1.msra.mxu0 0.0
      %131 = vmatprep.subr.mxu0 0.0
      %132 = vmatpush1.msra.mxu0 0.0
      %133 = vmatprep.subr.mxu0 0.0
      %134 = vmatpush1.msra.mxu0 0.0
      %135 = vmatprep.subr.mxu0 0.0
      %136 = vmatpush1.msra.mxu0 0.0
      %137 = vmatprep.subr.mxu0 0.0
      %138 = vmatpush1.msra.mxu0 0.0
      %139 = vmatprep.subr.mxu0 0.0
      %140 = vmatpush1.msra.mxu0 0.0
      %141 = vmatprep.subr.mxu0 0.0
      %142 = vmatpush1.msra.mxu0 0.0
      %143 = vmatprep.subr.mxu0 0.0
      %144 = vmatpush1.msra.mxu0 0.0
      %145 = vmatprep.subr.mxu0 0.0
      %146 = vmatpush1.msra.mxu0 0.0
      %147 = vmatprep.subr.mxu0 0.0
      %148 = vmatpush1.msra.mxu0 0.0
      %149 = vmatprep.subr.mxu0 0.0
      %150 = vmatpush1.msra.mxu0 0.0
      %151 = vmatprep.subr.mxu0 0.0
      %152 = vmatpush1.msra.mxu0 0.0
      %153 = vmatprep.subr.mxu0 0.0
      %154 = vmatpush1.msra.mxu0 0.0
      %155 = vmatprep.subr.mxu0 0.0
      %156 = vmatpush1.msra.mxu0 0.0
      %157 = vmatprep.subr.mxu0 0.0
      %158 = vmatpush1.msra.mxu0 0.0
      %159 = vmatprep.subr.mxu0 0.0
      %160 = vmatpush1.msra.mxu0 0.0
      %161 = vmatprep.subr.mxu0 0.0
      %162 = vmatpush1.msra.mxu0 0.0
      %163 = vmatprep.subr.mxu0 0.0
      %164 = vmatpush1.msra.mxu0 0.0
      %165 = vmatprep.subr.mxu0 0.0
      %166 = vmatpush1.msra.mxu0 0.0
      %167 = vmatprep.mubr.f32.mxu0 0.0
      %168 = vmatmul.mubr.f32.gmra.mrb[0].mxu0 %v101
      %v169 = vpop.f32.mrb[0].mxu0
      %v170 = vadd.f32 %v97, %v169
      %v171 = vpop.f32.mrb[0].mxu0
      %172 = vdwg.mxu0
      %v173 = vxor.u32 %v170, 2147483648
      %v174 = vmul.f32 %v173, 1.442695
      %v175 = vpow.pop %v174
      %v176 = vadd.f32 %v175, 1.0
      %v177 = vrcp.pop %v176
      %v178 = vmul.f32 1.0, %v177
      %v179 = vmul.f32 %v170, %v178
      %vm180 = vcmask 523264
      %181 = vst.msk [vmem:[#allocation2] sm:$0xff] %vm180, %v179
    $region45: #{tpu_custom_call.1} parent=1 // pred_fallthru
      _
    %v182 = vld [vmem:[#allocation2] sm:$0xff]
    %v183 = vld [vmem:[#allocation9] sm:$0xff]
    %v184 = vld [vmem:[#allocation9 + $0x8] sm:$0xff]
    %v185 = vld [vmem:[#allocation9 + $0x10] sm:$0xff]
    %v186 = vld [vmem:[#allocation9 + $0x18] sm:$0xff]
    %v187 = vld [vmem:[#allocation9 + $0x20] sm:$0xff]
    %v188 = vld [vmem:[#allocation9 + $0x28] sm:$0xff]
    %v189 = vld [vmem:[#allocation9 + $0x30] sm:$0xff]
    %v190 = vld [vmem:[#allocation9 + $0x38] sm:$0xff]
    %v191 = vld [vmem:[#allocation11] sm:$0x1]
    %v193 = vlaneseq
    %v194 = vshrl.u32 %v193, 7
    %v195 = vsub.s32 0, %v194
    %v196 = vrot.slane %v191, %v195
    %vm198 = vcmask 523264
    %v200 = vsel %vm198, %v182, 0
    %202 = vmatprep.subr.mxu0 0.0
    %203 = vmatpush1.msra.mxu0 %v183
    %204 = vmatprep.subr.mxu0 0.0
    %205 = vmatpush1.msra.mxu0 %v184
    %206 = vmatprep.subr.mxu0 0.0
    %207 = vmatpush1.msra.mxu0 %v185
    %208 = vmatprep.subr.mxu0 0.0
    %209 = vmatpush1.msra.mxu0 %v186
    %210 = vmatprep.subr.mxu0 0.0
    %211 = vmatpush1.msra.mxu0 %v187
    %212 = vmatprep.subr.mxu0 0.0
    %213 = vmatpush1.msra.mxu0 %v188
    %214 = vmatprep.subr.mxu0 0.0
    %215 = vmatpush1.msra.mxu0 %v189
    %216 = vmatprep.subr.mxu0 0.0
    %217 = vmatpush1.msra.mxu0 %v190
    %218 = vmatprep.subr.mxu0 0.0
    %219 = vmatpush1.msra.mxu0 0.0
    %220 = vmatprep.subr.mxu0 0.0
    %221 = vmatpush1.msra.mxu0 0.0
    %222 = vmatprep.subr.mxu0 0.0
    %223 = vmatpush1.msra.mxu0 0.0
    %224 = vmatprep.subr.mxu0 0.0
    %225 = vmatpush1.msra.mxu0 0.0
    %226 = vmatprep.subr.mxu0 0.0
    %227 = vmatpush1.msra.mxu0 0.0
    %228 = vmatprep.subr.mxu0 0.0
    %229 = vmatpush1.msra.mxu0 0.0
    %230 = vmatprep.subr.mxu0 0.0
    %231 = vmatpush1.msra.mxu0 0.0
    %232 = vmatprep.subr.mxu0 0.0
    %233 = vmatpush1.msra.mxu0 0.0
    %234 = vmatprep.subr.mxu0 0.0
    %235 = vmatpush1.msra.mxu0 0.0
    %236 = vmatprep.subr.mxu0 0.0
    %237 = vmatpush1.msra.mxu0 0.0
    %238 = vmatprep.subr.mxu0 0.0
    %239 = vmatpush1.msra.mxu0 0.0
    %240 = vmatprep.subr.mxu0 0.0
    %241 = vmatpush1.msra.mxu0 0.0
    %242 = vmatprep.subr.mxu0 0.0
    %243 = vmatpush1.msra.mxu0 0.0
    %244 = vmatprep.subr.mxu0 0.0
    %245 = vmatpush1.msra.mxu0 0.0
    %246 = vmatprep.subr.mxu0 0.0
    %247 = vmatpush1.msra.mxu0 0.0
    %248 = vmatprep.subr.mxu0 0.0
    %249 = vmatpush1.msra.mxu0 0.0
    %250 = vmatprep.subr.mxu0 0.0
    %251 = vmatpush1.msra.mxu0 0.0
    %252 = vmatprep.subr.mxu0 0.0
    %253 = vmatpush1.msra.mxu0 0.0
    %254 = vmatprep.subr.mxu0 0.0
    %255 = vmatpush1.msra.mxu0 0.0
    %256 = vmatprep.subr.mxu0 0.0
    %257 = vmatpush1.msra.mxu0 0.0
    %258 = vmatprep.subr.mxu0 0.0
    %259 = vmatpush1.msra.mxu0 0.0
    %260 = vmatprep.subr.mxu0 0.0
    %261 = vmatpush1.msra.mxu0 0.0
    %262 = vmatprep.subr.mxu0 0.0
    %263 = vmatpush1.msra.mxu0 0.0
    %264 = vmatprep.subr.mxu0 0.0
    %265 = vmatpush1.msra.mxu0 0.0
    %266 = vmatprep.mubr.f32.mxu0 0.0
    %267 = vmatmul.mubr.f32.gmra.mrb[0].mxu0 %v200
    %v268 = vpop.f32.mrb[0].mxu0
    %v269 = vadd.f32 %v196, %v268
    %v270 = vpop.f32.mrb[0].mxu0
    %271 = vdwg.mxu0
    %272 = vst.msk [vmem:[#allocation12] sm:$0xff] %vm198, %v269
    // Predicated region
    $region46: #{tpu_custom_call.1} parent=1 // pred_check
      _
    $region47: #{tpu_custom_call.1} parent=1 // pred_check_branch
      %274 = sbr.rel (0) target = $region49
    $region48: #{tpu_custom_call.1} parent=1 // pred_region
      %s276 = ssub.s32 128, 128
      %277 = vsyncadd [#allocation5], %s276
      %s279 = sshll.u32 [#allocation12], 4
      %s280 = int_to_ptr.vmem [resolvable:$true] %s279
      %282 = dma.vmem_to_hbm [thread:$0]  %s280, 128, %s5, [#allocation5]
    $region49: #{tpu_custom_call.1} parent=1 // pred_fallthru
      _
    // Predicated region
    $region50: #{tpu_custom_call.1} parent=1 // pred_check
      _
    $region51: #{tpu_custom_call.1} parent=1 // pred_check_branch
      %284 = sbr.rel (0) target = $region53
    $region52: #{tpu_custom_call.1} parent=1 // pred_region
      %285 = dma.done [#allocation5], 128
    $region53: #{tpu_custom_call.1} parent=1 // pred_fallthru
      _
    %286 = vsyncpa [#allocation4], 1
    %287 = vsyncpa [#allocation7], 1
    %288 = vsyncpa [#allocation10], 1
    %289 = vsyncpa [#allocation5], 1

// kernel: tpu_custom_call.1
$region0: #{tpu_custom_call.1}
  #allocation0 [shape = 'u32[]', space=smem, size = 0x4, offset = 0x4, fixed_abs, tag = 'smem constant byte address 0x4 - core index']
  #allocation1 [shape = 'u32[144,128]{1,0:T(1,128)}', space=vmem, size = 0x12000, scoped, tag = 'internal scratch']
  #allocation2 [shape = 'f32[8,64]{1,0:T(8,128)}', space=vmem, size = 0x1000, scoped, tag = 'scratch operand']
  %s0 = inlined_call_operand.hbm [shape: f32[8,32], index: 0, kind: input, shape index: {}]
  %s1 = inlined_call_operand.hbm [shape: f32[32,64], index: 1, kind: input, shape index: {}]
  %s2 = inlined_call_operand.hbm [shape: f32[1,64], index: 2, kind: input, shape index: {}]
  %s3 = inlined_call_operand.hbm [shape: f32[64,64], index: 3, kind: input, shape index: {}]
  %s4 = inlined_call_operand.hbm [shape: f32[1,64], index: 4, kind: input, shape index: {}]
  %s5 = inlined_call_operand.hbm [shape: f32[8,64], index: 5, kind: output, shape index: {}]
  %s6 = sld [smem:[#allocation0]]
  $region54: #{tpu_custom_call.1} parent=0
    _
  %s8 = ssub.s32 1, %s6
  %s9 = scalar_select 0, %s8, %s6
  $region1: #{tpu_custom_call.1} parent=0
    #allocation3 [shape = 'u8[4096]{0}', space=vmem, size = 0x1000, scoped, tag = 'input window, operand 0, single buffered']
    #allocation4 [shape = 's32[1]{0}', space=sflag, size = 0x4, scoped, tag = 'scoped memory for tpu_custom_call.1']
    #allocation5 [shape = 's32[1]{0}', space=sflag, size = 0x4, scoped, tag = 'scoped memory for tpu_custom_call.1']
    #allocation6 [shape = 'u8[16384]{0}', space=vmem, size = 0x4000, scoped, tag = 'input window, operand 1, single buffered']
    #allocation7 [shape = 's32[1]{0}', space=sflag, size = 0x4, scoped, tag = 'scoped memory for tpu_custom_call.1']
    #allocation8 [shape = 'u8[512]{0}', space=vmem, size = 0x400, scoped, tag = 'input window, operand 2, single buffered']
    #allocation9 [shape = 'u8[32768]{0}', space=vmem, size = 0x8000, scoped, tag = 'input window, operand 3, single buffered']
    #allocation10 [shape = 's32[1]{0}', space=sflag, size = 0x4, scoped, tag = 'scoped memory for tpu_custom_call.1']
    #allocation11 [shape = 'u8[512]{0}', space=vmem, size = 0x400, scoped, tag = 'input window, operand 4, single buffered']
    #allocation12 [shape = 'u8[4096]{0}', space=vmem, size = 0x1000, scoped, tag = 'output window, operand 0, single buffered']
    %10 = vsyncpa [#allocation4], 0
    %11 = vsyncpa [#allocation7], 0
    %12 = vsyncpa [#allocation10], 0
    %13 = vsyncpa [#allocation5], 0
    // Predicated region
    $region2: #{tpu_custom_call.1} parent=1 // pred_check
      _
    $region3: #{tpu_custom_call.1} parent=1 // pred_check_branch
      %15 = sbr.rel (0) target = $region5
    $region4: #{tpu_custom_call.1} parent=1 // pred_region
      %s17 = ssub.s32 128, 128
      %18 = vsyncadd [#allocation4], %s17
      %s20 = sshll.u32 [#allocation3], 4
      %s21 = int_to_ptr.vmem [resolvable:$true] %s20
      %23 = dma.hbm_to_vmem [thread:$0]  %s0, 128, %s21, [#allocation4]
    $region5: #{tpu_custom_call.1} parent=1 // pred_fallthru
      _
    // Predicated region
    $region6: #{tpu_custom_call.1} parent=1 // pred_check
      _
    $region7: #{tpu_custom_call.1} parent=1 // pred_check_branch
      %25 = sbr.rel (0) target = $region9
    $region8: #{tpu_custom_call.1} parent=1 // pred_region
      %s27 = ssub.s32 512, 512
      %28 = vsyncadd [#allocation7], %s27
      %s29 = sshll.u32 [#allocation6], 4
      %s30 = int_to_ptr.vmem [resolvable:$true] %s29
      %35 = dma.hbm_to_vmem [thread:$0]  %s1, 512, %s30, [#allocation7], 128, 128, 8
    $region9: #{tpu_custom_call.1} parent=1 // pred_fallthru
      _
    // Predicated region
    $region10: #{tpu_custom_call.1} parent=1 // pred_check
      _
    $region11: #{tpu_custom_call.1} parent=1 // pred_check_branch
      %37 = sbr.rel (0) target = $region13
    $region12: #{tpu_custom_call.1} parent=1 // pred_region
      %s39 = ssub.s32 16, 16
      %40 = vsyncadd [#allocation7], %s39
      %s42 = sshll.u32 [#allocation8], 4
      %s43 = int_to_ptr.vmem [resolvable:$true] %s42
      %45 = dma.hbm_to_vmem [thread:$0]  %s2, 16, %s43, [#allocation7]
    $region13: #{tpu_custom_call.1} parent=1 // pred_fallthru
      _
    // Predicated region
    $region14: #{tpu_custom_call.1} parent=1 // pred_check
      _
    $region15: #{tpu_custom_call.1} parent=1 // pred_check_branch
      %47 = sbr.rel (0) target = $region17
    $region16: #{tpu_custom_call.1} parent=1 // pred_region
      %s49 = ssub.s32 1024, 1024
      %50 = vsyncadd [#allocation10], %s49
      %s51 = sshll.u32 [#allocation9], 4
      %s52 = int_to_ptr.vmem [resolvable:$true] %s51
      %57 = dma.hbm_to_vmem [thread:$0]  %s3, 1024, %s52, [#allocation10], 128, 128, 8
    $region17: #{tpu_custom_call.1} parent=1 // pred_fallthru
      _
    // Predicated region
    $region18: #{tpu_custom_call.1} parent=1 // pred_check
      _
    $region19: #{tpu_custom_call.1} parent=1 // pred_check_branch
      %59 = sbr.rel (0) target = $region21
    $region20: #{tpu_custom_call.1} parent=1 // pred_region
      %s61 = ssub.s32 16, 16
      %62 = vsyncadd [#allocation10], %s61
      %s64 = sshll.u32 [#allocation11], 4
      %s65 = int_to_ptr.vmem [resolvable:$true] %s64
      %67 = dma.hbm_to_vmem [thread:$0]  %s4, 16, %s65, [#allocation10]
    $region21: #{tpu_custom_call.1} parent=1 // pred_fallthru
      _
    // Predicated region
    $region22: #{tpu_custom_call.1} parent=1 // pred_check
      _
    $region23: #{tpu_custom_call.1} parent=1 // pred_check_branch
      %69 = sbr.rel (0) target = $region25
    $region24: #{tpu_custom_call.1} parent=1 // pred_region
      %70 = dma.done [#allocation4], 128
    $region25: #{tpu_custom_call.1} parent=1 // pred_fallthru
      _
    // Predicated region
    $region26: #{tpu_custom_call.1} parent=1 // pred_check
      _
    $region27: #{tpu_custom_call.1} parent=1 // pred_check_branch
      %72 = sbr.rel (0) target = $region29
    $region28: #{tpu_custom_call.1} parent=1 // pred_region
      %73 = dma.done [#allocation7], 512
    $region29: #{tpu_custom_call.1} parent=1 // pred_fallthru
      _
    // Predicated region
    $region30: #{tpu_custom_call.1} parent=1 // pred_check
      _
    $region31: #{tpu_custom_call.1} parent=1 // pred_check_branch
      %75 = sbr.rel (0) target = $region33
    $region32: #{tpu_custom_call.1} parent=1 // pred_region
      %76 = dma.done [#allocation7], 16
    $region33: #{tpu_custom_call.1} parent=1 // pred_fallthru
      _
    // Predicated region
    $region34: #{tpu_custom_call.1} parent=1 // pred_check
      _
    $region35: #{tpu_custom_call.1} parent=1 // pred_check_branch
      %78 = sbr.rel (0) target = $region37
    $region36: #{tpu_custom_call.1} parent=1 // pred_region
      %79 = dma.done [#allocation10], 1024
    $region37: #{tpu_custom_call.1} parent=1 // pred_fallthru
      _
    // Predicated region
    $region38: #{tpu_custom_call.1} parent=1 // pred_check
      _
    $region39: #{tpu_custom_call.1} parent=1 // pred_check_branch
      %81 = sbr.rel (0) target = $region41
    $region40: #{tpu_custom_call.1} parent=1 // pred_region
      %82 = dma.done [#allocation10], 16
    $region41: #{tpu_custom_call.1} parent=1 // pred_fallthru
      _
    %p83 = scmp.eq.s32.totalorder 0, 0
    // Predicated region
    $region42: #{tpu_custom_call.1} parent=1 // pred_check
      %p84 = pneg %p83
    $region43: #{tpu_custom_call.1} parent=1 // pred_check_branch
      %86 = sbr.rel (%p84) target = $region45
    $region44: #{tpu_custom_call.1} parent=1 // pred_region
      %v87 = vld [vmem:[#allocation3] sm:$0xff]
      %v88 = vld [vmem:[#allocation6] sm:$0xff]
      %v89 = vld [vmem:[#allocation6 + $0x8] sm:$0xff]
      %v90 = vld [vmem:[#allocation6 + $0x10] sm:$0xff]
      %v91 = vld [vmem:[#allocation6 + $0x18] sm:$0xff]
      %v92 = vld [vmem:[#allocation8] sm:$0x1]
      %v94 = vlaneseq
      %v95 = vshrl.u32 %v94, 7
      %v96 = vsub.s32 0, %v95
      %v97 = vrot.slane %v92, %v96
      %vm99 = vcmask 261120
      %v101 = vsel %vm99, %v87, 0
      %103 = vmatprep.subr.mxu0 0.0
      %104 = vmatpush1.msra.mxu0 %v88
      %105 = vmatprep.subr.mxu0 0.0
      %106 = vmatpush1.msra.mxu0 %v89
      %107 = vmatprep.subr.mxu0 0.0
      %108 = vmatpush1.msra.mxu0 %v90
      %109 = vmatprep.subr.mxu0 0.0
      %110 = vmatpush1.msra.mxu0 %v91
      %111 = vmatprep.subr.mxu0 0.0
      %112 = vmatpush1.msra.mxu0 0.0
      %113 = vmatprep.subr.mxu0 0.0
      %114 = vmatpush1.msra.mxu0 0.0
      %115 = vmatprep.subr.mxu0 0.0
      %116 = vmatpush1.msra.mxu0 0.0
      %117 = vmatprep.subr.mxu0 0.0
      %118 = vmatpush1.msra.mxu0 0.0
      %119 = vmatprep.subr.mxu0 0.0
      %120 = vmatpush1.msra.mxu0 0.0
      %121 = vmatprep.subr.mxu0 0.0
      %122 = vmatpush1.msra.mxu0 0.0
      %123 = vmatprep.subr.mxu0 0.0
      %124 = vmatpush1.msra.mxu0 0.0
      %125 = vmatprep.subr.mxu0 0.0
      %126 = vmatpush1.msra.mxu0 0.0
      %127 = vmatprep.subr.mxu0 0.0
      %128 = vmatpush1.msra.mxu0 0.0
      %129 = vmatprep.subr.mxu0 0.0
      %130 = vmatpush1.msra.mxu0 0.0
      %131 = vmatprep.subr.mxu0 0.0
      %132 = vmatpush1.msra.mxu0 0.0
      %133 = vmatprep.subr.mxu0 0.0
      %134 = vmatpush1.msra.mxu0 0.0
      %135 = vmatprep.subr.mxu0 0.0
      %136 = vmatpush1.msra.mxu0 0.0
      %137 = vmatprep.subr.mxu0 0.0
      %138 = vmatpush1.msra.mxu0 0.0
      %139 = vmatprep.subr.mxu0 0.0
      %140 = vmatpush1.msra.mxu0 0.0
      %141 = vmatprep.subr.mxu0 0.0
      %142 = vmatpush1.msra.mxu0 0.0
      %143 = vmatprep.subr.mxu0 0.0
      %144 = vmatpush1.msra.mxu0 0.0
      %145 = vmatprep.subr.mxu0 0.0
      %146 = vmatpush1.msra.mxu0 0.0
      %147 = vmatprep.subr.mxu0 0.0
      %148 = vmatpush1.msra.mxu0 0.0
      %149 = vmatprep.subr.mxu0 0.0
      %150 = vmatpush1.msra.mxu0 0.0
      %151 = vmatprep.subr.mxu0 0.0
      %152 = vmatpush1.msra.mxu0 0.0
      %153 = vmatprep.subr.mxu0 0.0
      %154 = vmatpush1.msra.mxu0 0.0
      %155 = vmatprep.subr.mxu0 0.0
      %156 = vmatpush1.msra.mxu0 0.0
      %157 = vmatprep.subr.mxu0 0.0
      %158 = vmatpush1.msra.mxu0 0.0
      %159 = vmatprep.subr.mxu0 0.0
      %160 = vmatpush1.msra.mxu0 0.0
      %161 = vmatprep.subr.mxu0 0.0
      %162 = vmatpush1.msra.mxu0 0.0
      %163 = vmatprep.subr.mxu0 0.0
      %164 = vmatpush1.msra.mxu0 0.0
      %165 = vmatprep.subr.mxu0 0.0
      %166 = vmatpush1.msra.mxu0 0.0
      %167 = vmatprep.mubr.f32.mxu0 0.0
      %168 = vmatmul.mubr.f32.gmra.mrb[0].mxu0 %v101
      %v169 = vpop.f32.mrb[0].mxu0
      %v170 = vadd.f32 %v97, %v169
      %v171 = vpop.f32.mrb[0].mxu0
      %172 = vdwg.mxu0
      %v173 = vxor.u32 %v170, 2147483648
      %v174 = vmul.f32 %v173, 1.442695
      %v175 = vpow.pop %v174
      %v176 = vadd.f32 %v175, 1.0
      %v177 = vrcp.pop %v176
      %v178 = vmul.f32 1.0, %v177
      %v179 = vmul.f32 %v170, %v178
      %vm180 = vcmask 523264
      %181 = vst.msk [vmem:[#allocation2] sm:$0xff] %vm180, %v179
    $region45: #{tpu_custom_call.1} parent=1 // pred_fallthru
      _
    %v182 = vld [vmem:[#allocation2] sm:$0xff]
    %v183 = vld [vmem:[#allocation9] sm:$0xff]
    %v184 = vld [vmem:[#allocation9 + $0x8] sm:$0xff]
    %v185 = vld [vmem:[#allocation9 + $0x10] sm:$0xff]
    %v186 = vld [vmem:[#allocation9 + $0x18] sm:$0xff]
    %v187 = vld [vmem:[#allocation9 + $0x20] sm:$0xff]
    %v188 = vld [vmem:[#allocation9 + $0x28] sm:$0xff]
    %v189 = vld [vmem:[#allocation9 + $0x30] sm:$0xff]
    %v190 = vld [vmem:[#allocation9 + $0x38] sm:$0xff]
    %v191 = vld [vmem:[#allocation11] sm:$0x1]
    %v193 = vlaneseq
    %v194 = vshrl.u32 %v193, 7
    %v195 = vsub.s32 0, %v194
    %v196 = vrot.slane %v191, %v195
    %vm198 = vcmask 523264
    %v200 = vsel %vm198, %v182, 0
    %202 = vmatprep.subr.mxu0 0.0
    %203 = vmatpush1.msra.mxu0 %v183
    %204 = vmatprep.subr.mxu0 0.0
    %205 = vmatpush1.msra.mxu0 %v184
    %206 = vmatprep.subr.mxu0 0.0
    %207 = vmatpush1.msra.mxu0 %v185
    %208 = vmatprep.subr.mxu0 0.0
    %209 = vmatpush1.msra.mxu0 %v186
    %210 = vmatprep.subr.mxu0 0.0
    %211 = vmatpush1.msra.mxu0 %v187
    %212 = vmatprep.subr.mxu0 0.0
    %213 = vmatpush1.msra.mxu0 %v188
    %214 = vmatprep.subr.mxu0 0.0
    %215 = vmatpush1.msra.mxu0 %v189
    %216 = vmatprep.subr.mxu0 0.0
    %217 = vmatpush1.msra.mxu0 %v190
    %218 = vmatprep.subr.mxu0 0.0
    %219 = vmatpush1.msra.mxu0 0.0
    %220 = vmatprep.subr.mxu0 0.0
    %221 = vmatpush1.msra.mxu0 0.0
    %222 = vmatprep.subr.mxu0 0.0
    %223 = vmatpush1.msra.mxu0 0.0
    %224 = vmatprep.subr.mxu0 0.0
    %225 = vmatpush1.msra.mxu0 0.0
    %226 = vmatprep.subr.mxu0 0.0
    %227 = vmatpush1.msra.mxu0 0.0
    %228 = vmatprep.subr.mxu0 0.0
    %229 = vmatpush1.msra.mxu0 0.0
    %230 = vmatprep.subr.mxu0 0.0
    %231 = vmatpush1.msra.mxu0 0.0
    %232 = vmatprep.subr.mxu0 0.0
    %233 = vmatpush1.msra.mxu0 0.0
    %234 = vmatprep.subr.mxu0 0.0
    %235 = vmatpush1.msra.mxu0 0.0
    %236 = vmatprep.subr.mxu0 0.0
    %237 = vmatpush1.msra.mxu0 0.0
    %238 = vmatprep.subr.mxu0 0.0
    %239 = vmatpush1.msra.mxu0 0.0
    %240 = vmatprep.subr.mxu0 0.0
    %241 = vmatpush1.msra.mxu0 0.0
    %242 = vmatprep.subr.mxu0 0.0
    %243 = vmatpush1.msra.mxu0 0.0
    %244 = vmatprep.subr.mxu0 0.0
    %245 = vmatpush1.msra.mxu0 0.0
    %246 = vmatprep.subr.mxu0 0.0
    %247 = vmatpush1.msra.mxu0 0.0
    %248 = vmatprep.subr.mxu0 0.0
    %249 = vmatpush1.msra.mxu0 0.0
    %250 = vmatprep.subr.mxu0 0.0
    %251 = vmatpush1.msra.mxu0 0.0
    %252 = vmatprep.subr.mxu0 0.0
    %253 = vmatpush1.msra.mxu0 0.0
    %254 = vmatprep.subr.mxu0 0.0
    %255 = vmatpush1.msra.mxu0 0.0
    %256 = vmatprep.subr.mxu0 0.0
    %257 = vmatpush1.msra.mxu0 0.0
    %258 = vmatprep.subr.mxu0 0.0
    %259 = vmatpush1.msra.mxu0 0.0
    %260 = vmatprep.subr.mxu0 0.0
    %261 = vmatpush1.msra.mxu0 0.0
    %262 = vmatprep.subr.mxu0 0.0
    %263 = vmatpush1.msra.mxu0 0.0
    %264 = vmatprep.subr.mxu0 0.0
    %265 = vmatpush1.msra.mxu0 0.0
    %266 = vmatprep.mubr.f32.mxu0 0.0
    %267 = vmatmul.mubr.f32.gmra.mrb[0].mxu0 %v200
    %v268 = vpop.f32.mrb[0].mxu0
    %v269 = vadd.f32 %v196, %v268
    %v270 = vpop.f32.mrb[0].mxu0
    %271 = vdwg.mxu0
    %272 = vst.msk [vmem:[#allocation12] sm:$0xff] %vm198, %v269
    // Predicated region
    $region46: #{tpu_custom_call.1} parent=1 // pred_check
      _
    $region47: #{tpu_custom_call.1} parent=1 // pred_check_branch
      %274 = sbr.rel (0) target = $region49
    $region48: #{tpu_custom_call.1} parent=1 // pred_region
      %s276 = ssub.s32 128, 128
      %277 = vsyncadd [#allocation5], %s276
      %s279 = sshll.u32 [#allocation12], 4
      %s280 = int_to_ptr.vmem [resolvable:$true] %s279
      %282 = dma.vmem_to_hbm [thread:$0]  %s280, 128, %s5, [#allocation5]
    $region49: #{tpu_custom_call.1} parent=1 // pred_fallthru
      _
    // Predicated region
    $region50: #{tpu_custom_call.1} parent=1 // pred_check
      _
    $region51: #{tpu_custom_call.1} parent=1 // pred_check_branch
      %284 = sbr.rel (0) target = $region53
    $region52: #{tpu_custom_call.1} parent=1 // pred_region
      %285 = dma.done [#allocation5], 128
    $region53: #{tpu_custom_call.1} parent=1 // pred_fallthru
      _
    %286 = vsyncpa [#allocation4], 1
    %287 = vsyncpa [#allocation7], 1
    %288 = vsyncpa [#allocation10], 1
    %289 = vsyncpa [#allocation5], 1

</llo_original>
